<compile_context>
chip_gen: v7x
topology: tpu7x:2x2x1
jax: 0.10.0
libtpu: 0.0.40
codegen_flags: <defaults>
</compile_context>

<pallas_src>
import jax
import jax.numpy as jnp
from jax import lax
from jax.experimental import pallas as pl


# ---------------------------------------------------------------------------
# Kernel 1: hoisted input projection
#   xp2d = x2d @ W_ih^T + (b_ih + b_hh)     x2d: (S*B, D_in) -> (S*B, 4H)
# One big MXU matmul covering every timestep at once.
# ---------------------------------------------------------------------------
def _input_proj_kernel(x_ref, w_ref, b_ref, xp_ref):
    xp_ref[...] = (
        jnp.dot(x_ref[...], w_ref[...], preferred_element_type=jnp.float32)
        + b_ref[...]
    ).astype(xp_ref.dtype)


def input_projection(x2d, w_t, b_row):
    """x2d: (S*B, D_in), w_t: (D_in, 4H), b_row: (1, 4H) -> (S*B, 4H)."""
    sb = x2d.shape[0]
    gdim = w_t.shape[-1]
    return pl.pallas_call(
        _input_proj_kernel,
        out_shape=jax.ShapeDtypeStruct((sb, gdim), x2d.dtype),
    )(x2d, w_t, b_row)


# ---------------------------------------------------------------------------
# Kernel 2: the LSTM recurrence for one layer, whole sequence in one call.
#   gates_t = xp[t] + h_{t-1} @ W_hh^T      (single matmul on the serial path)
#   PyTorch gate order: (i, f, g, o)
# (h, c) are carried as fori_loop values; per-step hidden states are written
# to the full (S, B, H) VMEM output block via dynamic leading-axis stores.
# ---------------------------------------------------------------------------
def _lstm_recurrent_kernel(xp_ref, h0_ref, c0_ref, w_hh_ref,
                           y_ref, hn_ref, cn_ref):
    seq = xp_ref.shape[0]
    hdim = h0_ref.shape[-1]

    def step(t, carry):
        h_prev, c_prev = carry
        gates = xp_ref[t] + jnp.dot(
            h_prev, w_hh_ref[...], preferred_element_type=jnp.float32)
        # NOTE: at 4H == 128 these 32-lane slices are sub-vreg extracts; cheap
        # at this size, revisit lane grouping if hidden_dim grows to 128+.
        i_g = jax.nn.sigmoid(gates[:, 0 * hdim:1 * hdim])
        f_g = jax.nn.sigmoid(gates[:, 1 * hdim:2 * hdim])
        g_g = jnp.tanh(gates[:, 2 * hdim:3 * hdim])
        o_g = jax.nn.sigmoid(gates[:, 3 * hdim:4 * hdim])
        c_new = f_g * c_prev + i_g * g_g
        h_new = o_g * jnp.tanh(c_new)
        y_ref[t] = h_new.astype(y_ref.dtype)
        return h_new, c_new

    h_fin, c_fin = lax.fori_loop(0, seq, step, (h0_ref[...], c0_ref[...]))
    hn_ref[...] = h_fin.astype(hn_ref.dtype)
    cn_ref[...] = c_fin.astype(cn_ref.dtype)


def lstm_recurrence(xp, h0, c0, w_hh_t):
    """xp: (S, B, 4H) pre-projected inputs, h0/c0: (B, H), w_hh_t: (H, 4H)."""
    seq, batch, _ = xp.shape
    hdim = h0.shape[-1]
    return pl.pallas_call(
        _lstm_recurrent_kernel,
        out_shape=(
            jax.ShapeDtypeStruct((seq, batch, hdim), h0.dtype),  # per-step h
            jax.ShapeDtypeStruct((batch, hdim), h0.dtype),       # h_n
            jax.ShapeDtypeStruct((batch, hdim), h0.dtype),       # c_n
        ),
    )(xp, h0, c0, w_hh_t)


# ---------------------------------------------------------------------------
# Kernel 3: output projection + sigmoid, one grid-less matmul over (S*B, H)
# with a lane-dense (padded-to-128) output slab.
# ---------------------------------------------------------------------------
def _output_proj_sigmoid_kernel(y_ref, w_ref, b_ref, o_ref):
    z = (jnp.dot(y_ref[...], w_ref[...], preferred_element_type=jnp.float32)
         + b_ref[...])
    o_ref[...] = jax.nn.sigmoid(z).astype(o_ref.dtype)


def output_projection_sigmoid(y2d, w_t_pad, b_row_pad):
    """y2d: (S*B, H), w_t_pad: (H, Vpad), b_row_pad: (1, Vpad) -> (S*B, Vpad)."""
    sb = y2d.shape[0]
    vpad = w_t_pad.shape[-1]
    return pl.pallas_call(
        _output_proj_sigmoid_kernel,
        out_shape=jax.ShapeDtypeStruct((sb, vpad), y2d.dtype),
    )(y2d, w_t_pad, b_row_pad)


# ---------------------------------------------------------------------------
# Parameters (mirroring PyTorch shapes / U(-1/sqrt(H), 1/sqrt(H)) init)
# ---------------------------------------------------------------------------
def init_params(key, hidden_dim, vocab_size, n_layers):
    k = 1.0 / jnp.sqrt(jnp.float32(hidden_dim))
    params = {"lstm": []}
    for layer in range(n_layers):
        din = vocab_size if layer == 0 else hidden_dim
        key, k1, k2, k3, k4 = jax.random.split(key, 5)
        w_ih = jax.random.uniform(k1, (4 * hidden_dim, din), jnp.float32, -k, k)
        w_hh = jax.random.uniform(k2, (4 * hidden_dim, hidden_dim), jnp.float32, -k, k)
        b_ih = jax.random.uniform(k3, (4 * hidden_dim,), jnp.float32, -k, k)
        b_hh = jax.random.uniform(k4, (4 * hidden_dim,), jnp.float32, -k, k)
        params["lstm"].append({
            "w_ih_t": jnp.transpose(w_ih),     # (din, 4H)
            "w_hh_t": jnp.transpose(w_hh),     # (H, 4H)
            "b": (b_ih + b_hh)[None, :],       # (1, 4H) combined bias
        })
    key, k5, k6 = jax.random.split(key, 3)
    w_lin = jax.random.uniform(k5, (vocab_size + 1, hidden_dim), jnp.float32, -k, k)
    b_lin = jax.random.uniform(k6, (vocab_size + 1,), jnp.float32, -k, k)
    params["linear"] = {"w_t": jnp.transpose(w_lin),   # (H, V+1)
                        "b": b_lin[None, :]}           # (1, V+1)
    return params


# ---------------------------------------------------------------------------
# Full MyLSTM forward
# ---------------------------------------------------------------------------
@jax.jit
def my_lstm_forward(params, inputs, h0, c0):
    """inputs: (S, B, vocab); h0/c0: (n_layers, B, H). Returns (out, (h_n, c_n))."""
    seq, batch, _ = inputs.shape
    x = inputs
    h_finals, c_finals = [], []
    for layer, p in enumerate(params["lstm"]):
        din = x.shape[-1]
        # Hoisted input projection: one matmul for all S timesteps.
        xp2d = input_projection(x.reshape(seq * batch, din), p["w_ih_t"], p["b"])
        xp = xp2d.reshape(seq, batch, xp2d.shape[-1])
        x, h_n, c_n = lstm_recurrence(xp, h0[layer], c0[layer], p["w_hh_t"])
        h_finals.append(h_n)
        c_finals.append(c_n)

    hdim = x.shape[-1]
    w_t = params["linear"]["w_t"]                 # (H, Vout)
    b_row = params["linear"]["b"]                 # (1, Vout)
    vout = w_t.shape[-1]
    vpad = ((vout + 127) // 128) * 128            # lane-dense output width
    w_t_pad = jnp.pad(w_t, ((0, 0), (0, vpad - vout)))
    b_pad = jnp.pad(b_row, ((0, 0), (0, vpad - vout)))
    out2d = output_projection_sigmoid(x.reshape(seq * batch, hdim), w_t_pad, b_pad)
    out = out2d.reshape(seq, batch, vpad)[:, :, :vout]
    return out, (jnp.stack(h_finals, axis=0), jnp.stack(c_finals, axis=0))


if __name__ == "__main__":
    # Small, module-consistent shapes.
    seq_len, batch = 8, 2
    vocab_size, hidden_dim, n_layers = 16, 32, 2

    key = jax.random.PRNGKey(0)
    key, pkey, xkey = jax.random.split(key, 3)

    params = init_params(pkey, hidden_dim, vocab_size, n_layers)
    inputs = jax.random.normal(xkey, (seq_len, batch, vocab_size), jnp.float32)

    # init_hidden(): zeros (n_layers, batch, hidden_dim) for both h0 and c0.
    h0 = jnp.zeros((n_layers, batch, hidden_dim), jnp.float32)
    c0 = jnp.zeros((n_layers, batch, hidden_dim), jnp.float32)

    output, (h_n, c_n) = my_lstm_forward(params, inputs, h0, c0)
    jax.block_until_ready((output, h_n, c_n))

    assert output.shape == (seq_len, batch, vocab_size + 1)
    assert h_n.shape == (n_layers, batch, hidden_dim)
    assert c_n.shape == (n_layers, batch, hidden_dim)
    assert bool(jnp.all(jnp.isfinite(output)))

    print("KERNEL_OK")
</pallas_src>

<mosaic_0001>
module attributes {stable_mosaic.version = 11 : i64} {
  func.func @_input_proj_kernel(%arg0: memref<16x32xf32, #tpu.memory_space<vmem>>, %arg1: memref<32x128xf32, #tpu.memory_space<vmem>>, %arg2: memref<1x128xf32, #tpu.memory_space<vmem>>, %arg3: memref<16x128xf32, #tpu.memory_space<vmem>>) attributes {dimension_semantics = [], scalar_prefetch = 0 : i64, scratch_operands = 0 : i64, tpu.core_type = #tpu.core_type<tc>} {
    %c0 = arith.constant 0 : index
    %c0_0 = arith.constant 0 : index
    %0 = vector.load %arg0[%c0, %c0_0] : memref<16x32xf32, #tpu.memory_space<vmem>>, vector<16x32xf32>
    %c0_1 = arith.constant 0 : index
    %c0_2 = arith.constant 0 : index
    %1 = vector.load %arg1[%c0_1, %c0_2] : memref<32x128xf32, #tpu.memory_space<vmem>>, vector<32x128xf32>
    %cst = arith.constant dense<0.000000e+00> : vector<16x128xf32>
    %2 = tpu.matmul %0, %1, %cst {dimension_numbers = #tpu.dot_dimension_numbers<[1], [0], [0], [1], [0, 0, 1, 1], [], []>} : vector<16x32xf32>, vector<32x128xf32>, vector<16x128xf32> -> vector<16x128xf32>
    %c0_3 = arith.constant 0 : index
    %c0_4 = arith.constant 0 : index
    %3 = vector.load %arg2[%c0_3, %c0_4] : memref<1x128xf32, #tpu.memory_space<vmem>>, vector<1x128xf32>
    %4 = vector.broadcast %3 : vector<1x128xf32> to vector<16x128xf32>
    %5 = arith.addf %2, %4 : vector<16x128xf32>
    %c0_5 = arith.constant 0 : index
    %c0_6 = arith.constant 0 : index
    %6 = vector.load %arg3[%c0_5, %c0_6] : memref<16x128xf32, #tpu.memory_space<vmem>>, vector<16x128xf32>
    tpu.vector_store %arg3[%c0_5, %c0_6], %5 {strides = array<i32>} : memref<16x128xf32, #tpu.memory_space<vmem>>, vector<16x128xf32>,
    return
  }
}

module attributes {stable_mosaic.version = 11 : i64} {
  func.func @_input_proj_kernel(%arg0: memref<16x16xf32, #tpu.memory_space<vmem>>, %arg1: memref<16x128xf32, #tpu.memory_space<vmem>>, %arg2: memref<1x128xf32, #tpu.memory_space<vmem>>, %arg3: memref<16x128xf32, #tpu.memory_space<vmem>>) attributes {dimension_semantics = [], scalar_prefetch = 0 : i64, scratch_operands = 0 : i64, tpu.core_type = #tpu.core_type<tc>} {
    %c0 = arith.constant 0 : index
    %c0_0 = arith.constant 0 : index
    %0 = vector.load %arg0[%c0, %c0_0] : memref<16x16xf32, #tpu.memory_space<vmem>>, vector<16x16xf32>
    %c0_1 = arith.constant 0 : index
    %c0_2 = arith.constant 0 : index
    %1 = vector.load %arg1[%c0_1, %c0_2] : memref<16x128xf32, #tpu.memory_space<vmem>>, vector<16x128xf32>
    %cst = arith.constant dense<0.000000e+00> : vector<16x128xf32>
    %2 = tpu.matmul %0, %1, %cst {dimension_numbers = #tpu.dot_dimension_numbers<[1], [0], [0], [1], [0, 0, 1, 1], [], []>} : vector<16x16xf32>, vector<16x128xf32>, vector<16x128xf32> -> vector<16x128xf32>
    %c0_3 = arith.constant 0 : index
    %c0_4 = arith.constant 0 : index
    %3 = vector.load %arg2[%c0_3, %c0_4] : memref<1x128xf32, #tpu.memory_space<vmem>>, vector<1x128xf32>
    %4 = vector.broadcast %3 : vector<1x128xf32> to vector<16x128xf32>
    %5 = arith.addf %2, %4 : vector<16x128xf32>
    %c0_5 = arith.constant 0 : index
    %c0_6 = arith.constant 0 : index
    %6 = vector.load %arg3[%c0_5, %c0_6] : memref<16x128xf32, #tpu.memory_space<vmem>>, vector<16x128xf32>
    tpu.vector_store %arg3[%c0_5, %c0_6], %5 {strides = array<i32>} : memref<16x128xf32, #tpu.memory_space<vmem>>, vector<16x128xf32>,
    return
  }
}

module attributes {stable_mosaic.version = 11 : i64} {
  func.func @_lstm_recurrent_kernel(%arg0: memref<8x2x128xf32, #tpu.memory_space<vmem>>, %arg1: memref<2x32xf32, #tpu.memory_space<vmem>>, %arg2: memref<2x32xf32, #tpu.memory_space<vmem>>, %arg3: memref<32x128xf32, #tpu.memory_space<vmem>>, %arg4: memref<8x2x32xf32, #tpu.memory_space<vmem>>, %arg5: memref<2x32xf32, #tpu.memory_space<vmem>>, %arg6: memref<2x32xf32, #tpu.memory_space<vmem>>) attributes {dimension_semantics = [], scalar_prefetch = 0 : i64, scratch_operands = 0 : i64, tpu.core_type = #tpu.core_type<tc>} {
    %c0 = arith.constant 0 : index
    %c0_0 = arith.constant 0 : index
    %0 = vector.load %arg1[%c0, %c0_0] : memref<2x32xf32, #tpu.memory_space<vmem>>, vector<2x32xf32>
    %c0_1 = arith.constant 0 : index
    %c0_2 = arith.constant 0 : index
    %1 = vector.load %arg2[%c0_1, %c0_2] : memref<2x32xf32, #tpu.memory_space<vmem>>, vector<2x32xf32>
    %c0_i32 = arith.constant 0 : i32
    %c8_i32 = arith.constant 8 : i32
    %2 = arith.addi %c0_i32, %c8_i32 : i32
    %c1_i32 = arith.constant 1 : i32
    %3:2 = scf.for %arg7 = %c0_i32 to %2 step %c1_i32 iter_args(%arg8 = %0, %arg9 = %1) -> (vector<2x32xf32>, vector<2x32xf32>)  : i32 {
      %6 = arith.index_cast %arg7 : i32 to index
      %c0_8 = arith.constant 0 : index
      %c0_9 = arith.constant 0 : index
      %7 = vector.load %arg0[%6, %c0_8, %c0_9] : memref<8x2x128xf32, #tpu.memory_space<vmem>>, vector<1x2x128xf32>
      %8 = vector.shape_cast %7 : vector<1x2x128xf32> to vector<2x128xf32>
      %c0_10 = arith.constant 0 : index
      %c0_11 = arith.constant 0 : index
      %9 = vector.load %arg3[%c0_10, %c0_11] : memref<32x128xf32, #tpu.memory_space<vmem>>, vector<32x128xf32>
      %cst = arith.constant dense<0.000000e+00> : vector<2x128xf32>
      %10 = tpu.matmul %arg8, %9, %cst {dimension_numbers = #tpu.dot_dimension_numbers<[1], [0], [0], [1], [0, 0, 1, 1], [], []>} : vector<2x32xf32>, vector<32x128xf32>, vector<2x128xf32> -> vector<2x128xf32>
      %11 = arith.addf %8, %10 : vector<2x128xf32>
      %12 = vector.extract_strided_slice %11 {offsets = [0, 0], sizes = [2, 32], strides = [1, 1]} : vector<2x128xf32> to vector<2x32xf32>
      %13 = arith.negf %12 : vector<2x32xf32>
      %14 = math.exp %13 : vector<2x32xf32>
      %cst_12 = arith.constant 1.000000e+00 : f32
      %15 = vector.broadcast %cst_12 : f32 to vector<2x32xf32>
      %16 = arith.addf %15, %14 : vector<2x32xf32>
      %17 = arith.divf %15, %16 : vector<2x32xf32>
      %18 = vector.extract_strided_slice %11 {offsets = [0, 32], sizes = [2, 32], strides = [1, 1]} : vector<2x128xf32> to vector<2x32xf32>
      %19 = arith.negf %18 : vector<2x32xf32>
      %20 = math.exp %19 : vector<2x32xf32>
      %cst_13 = arith.constant 1.000000e+00 : f32
      %21 = vector.broadcast %cst_13 : f32 to vector<2x32xf32>
      %22 = arith.addf %21, %20 : vector<2x32xf32>
      %23 = arith.divf %21, %22 : vector<2x32xf32>
      %24 = vector.extract_strided_slice %11 {offsets = [0, 64], sizes = [2, 32], strides = [1, 1]} : vector<2x128xf32> to vector<2x32xf32>
      %25 = math.tanh %24 : vector<2x32xf32>
      %26 = vector.extract_strided_slice %11 {offsets = [0, 96], sizes = [2, 32], strides = [1, 1]} : vector<2x128xf32> to vector<2x32xf32>
      %27 = arith.negf %26 : vector<2x32xf32>
      %28 = math.exp %27 : vector<2x32xf32>
      %cst_14 = arith.constant 1.000000e+00 : f32
      %29 = vector.broadcast %cst_14 : f32 to vector<2x32xf32>
      %30 = arith.addf %29, %28 : vector<2x32xf32>
      %31 = arith.divf %29, %30 : vector<2x32xf32>
      %32 = arith.mulf %23, %arg9 : vector<2x32xf32>
      %33 = arith.mulf %17, %25 : vector<2x32xf32>
      %34 = arith.addf %32, %33 : vector<2x32xf32>
      %35 = math.tanh %34 : vector<2x32xf32>
      %36 = arith.mulf %31, %35 : vector<2x32xf32>
      %37 = arith.index_cast %arg7 : i32 to index
      %c0_15 = arith.constant 0 : index
      %c0_16 = arith.constant 0 : index
      %38 = vector.load %arg4[%37, %c0_15, %c0_16] : memref<8x2x32xf32, #tpu.memory_space<vmem>>, vector<1x2x32xf32>
      %39 = vector.shape_cast %38 : vector<1x2x32xf32> to vector<2x32xf32>
      %40 = vector.shape_cast %36 : vector<2x32xf32> to vector<1x2x32xf32>
      tpu.vector_store %arg4[%37, %c0_15, %c0_16], %40 {strides = array<i32>} : memref<8x2x32xf32, #tpu.memory_space<vmem>>, vector<1x2x32xf32>,
      scf.yield %36, %34 : vector<2x32xf32>, vector<2x32xf32>
    }
    %c8_i32_3 = arith.constant 8 : i32
    %c0_4 = arith.constant 0 : index
    %c0_5 = arith.constant 0 : index
    %4 = vector.load %arg5[%c0_4, %c0_5] : memref<2x32xf32, #tpu.memory_space<vmem>>, vector<2x32xf32>
    tpu.vector_store %arg5[%c0_4, %c0_5], %3#0 {strides = array<i32>} : memref<2x32xf32, #tpu.memory_space<vmem>>, vector<2x32xf32>,
    %c0_6 = arith.constant 0 : index
    %c0_7 = arith.constant 0 : index
    %5 = vector.load %arg6[%c0_6, %c0_7] : memref<2x32xf32, #tpu.memory_space<vmem>>, vector<2x32xf32>
    tpu.vector_store %arg6[%c0_6, %c0_7], %3#1 {strides = array<i32>} : memref<2x32xf32, #tpu.memory_space<vmem>>, vector<2x32xf32>,
    return
  }
}

module attributes {stable_mosaic.version = 11 : i64} {
  func.func @_output_proj_sigmoid_kernel(%arg0: memref<16x32xf32, #tpu.memory_space<vmem>>, %arg1: memref<32x128xf32, #tpu.memory_space<vmem>>, %arg2: memref<1x128xf32, #tpu.memory_space<vmem>>, %arg3: memref<16x128xf32, #tpu.memory_space<vmem>>) attributes {dimension_semantics = [], scalar_prefetch = 0 : i64, scratch_operands = 0 : i64, tpu.core_type = #tpu.core_type<tc>} {
    %c0 = arith.constant 0 : index
    %c0_0 = arith.constant 0 : index
    %0 = vector.load %arg0[%c0, %c0_0] : memref<16x32xf32, #tpu.memory_space<vmem>>, vector<16x32xf32>
    %c0_1 = arith.constant 0 : index
    %c0_2 = arith.constant 0 : index
    %1 = vector.load %arg1[%c0_1, %c0_2] : memref<32x128xf32, #tpu.memory_space<vmem>>, vector<32x128xf32>
    %cst = arith.constant dense<0.000000e+00> : vector<16x128xf32>
    %2 = tpu.matmul %0, %1, %cst {dimension_numbers = #tpu.dot_dimension_numbers<[1], [0], [0], [1], [0, 0, 1, 1], [], []>} : vector<16x32xf32>, vector<32x128xf32>, vector<16x128xf32> -> vector<16x128xf32>
    %c0_3 = arith.constant 0 : index
    %c0_4 = arith.constant 0 : index
    %3 = vector.load %arg2[%c0_3, %c0_4] : memref<1x128xf32, #tpu.memory_space<vmem>>, vector<1x128xf32>
    %4 = vector.broadcast %3 : vector<1x128xf32> to vector<16x128xf32>
    %5 = arith.addf %2, %4 : vector<16x128xf32>
    %6 = arith.negf %5 : vector<16x128xf32>
    %7 = math.exp %6 : vector<16x128xf32>
    %cst_5 = arith.constant 1.000000e+00 : f32
    %8 = vector.broadcast %cst_5 : f32 to vector<16x128xf32>
    %9 = arith.addf %8, %7 : vector<16x128xf32>
    %10 = arith.divf %8, %9 : vector<16x128xf32>
    %c0_6 = arith.constant 0 : index
    %c0_7 = arith.constant 0 : index
    %11 = vector.load %arg3[%c0_6, %c0_7] : memref<16x128xf32, #tpu.memory_space<vmem>>, vector<16x128xf32>
    tpu.vector_store %arg3[%c0_6, %c0_7], %10 {strides = array<i32>} : memref<16x128xf32, #tpu.memory_space<vmem>>, vector<16x128xf32>,
    return
  }
}

</mosaic_0001>

<llo_original>
// kernel: my_lstm_forward.6
$region0: #{my_lstm_forward.6}
  #allocation0 [shape = 'u32[]', space=smem, size = 0x4, offset = 0x4, fixed_abs, tag = 'smem constant byte address 0x4 - core index']
  #allocation1 [shape = 'u32[144,128]{1,0:T(1,128)}', space=vmem, size = 0x12000, scoped, tag = 'internal scratch']
  %s0 = inlined_call_operand.vmem [shape: f32[8,2,128], index: 0, kind: input, shape index: {}]
  %s1 = inlined_call_operand.vmem [shape: f32[2,32], index: 1, kind: input, shape index: {}]
  %s2 = inlined_call_operand.vmem [shape: f32[2,32], index: 2, kind: input, shape index: {}]
  %s3 = inlined_call_operand.vmem [shape: f32[32,128], index: 3, kind: input, shape index: {}]
  %s4 = inlined_call_operand.vmem [shape: f32[8,2,32], index: 4, kind: output, shape index: {0}]
  %s5 = inlined_call_operand.vmem [shape: f32[2,32], index: 5, kind: output, shape index: {1}]
  %s6 = inlined_call_operand.vmem [shape: f32[2,32], index: 6, kind: output, shape index: {2}]
  %7 = xla_tuple %s4, %s5, %s6
  %s8 = sld [smem:[#allocation0]]
  $region49: #{my_lstm_forward.6} parent=0
    _
  %s10 = ssub.s32 1, %s8
  %s11 = scalar_select 0, %s10, %s8
  // Predicated region
  $region2: #{my_lstm_forward.6} parent=0 // pred_check
    _
  $region3: #{my_lstm_forward.6} parent=0 // pred_check_branch
    %13 = sbr.rel (0) target = $region5
  $region4: #{my_lstm_forward.6} parent=0 // pred_region
    _
  $region5: #{my_lstm_forward.6} parent=0 // pred_fallthru
    _
  // Predicated region
  $region6: #{my_lstm_forward.6} parent=0 // pred_check
    _
  $region7: #{my_lstm_forward.6} parent=0 // pred_check_branch
    %15 = sbr.rel (0) target = $region9
  $region8: #{my_lstm_forward.6} parent=0 // pred_region
    _
  $region9: #{my_lstm_forward.6} parent=0 // pred_fallthru
    _
  // Predicated region
  $region10: #{my_lstm_forward.6} parent=0 // pred_check
    _
  $region11: #{my_lstm_forward.6} parent=0 // pred_check_branch
    %17 = sbr.rel (0) target = $region13
  $region12: #{my_lstm_forward.6} parent=0 // pred_region
    _
  $region13: #{my_lstm_forward.6} parent=0 // pred_fallthru
    _
  // Predicated region
  $region14: #{my_lstm_forward.6} parent=0 // pred_check
    _
  $region15: #{my_lstm_forward.6} parent=0 // pred_check_branch
    %19 = sbr.rel (0) target = $region17
  $region16: #{my_lstm_forward.6} parent=0 // pred_region
    _
  $region17: #{my_lstm_forward.6} parent=0 // pred_fallthru
    _
  %v20 = vld [vmem:[%s1] sm:$0x3]
  %v21 = vld [vmem:[%s2] sm:$0x3]
  loop: start=0, step=1, limit=8
  $region18: #{my_lstm_forward.6} parent=0 // loop_pre_header
    _
  $region19: #{my_lstm_forward.6} parent=0 // loop_header
    %s23 = sphi 0, %s27
    %p24 = scmp.ge.s32.totalorder %s23, 8
    %v28 = vphi %v20, %v142
    %v29 = vphi %v21, %v149
  $region20: #{my_lstm_forward.6} parent=0 // loop_header_branch
    %26 = sbr.rel (%p24) target = $region24
  $region21: #{my_lstm_forward.6} parent=0 // loop_body
    %s30 = smul.u32 %s23, 2
    %s31 = scalar_lea.vmem %s0, %s30
    %v32 = vld [vmem:[%s31] sm:$0x3]
    %v33 = vld [vmem:[%s3] sm:$0xff]
    %v34 = vld [vmem:[%s3 + $0x8] sm:$0xff]
    %v35 = vld [vmem:[%s3 + $0x10] sm:$0xff]
    %v36 = vld [vmem:[%s3 + $0x18] sm:$0xff]
    %vm37 = vcmask 261120
    %v39 = vsel %vm37, %v28, 0
    %41 = vmatprep.subr.mxu0 0.0
    %42 = vmatpush1.msra.mxu0 %v33
    %43 = vmatprep.subr.mxu0 0.0
    %44 = vmatpush1.msra.mxu0 %v34
    %45 = vmatprep.subr.mxu0 0.0
    %46 = vmatpush1.msra.mxu0 %v35
    %47 = vmatprep.subr.mxu0 0.0
    %48 = vmatpush1.msra.mxu0 %v36
    %49 = vmatprep.subr.mxu0 0.0
    %50 = vmatpush1.msra.mxu0 0.0
    %51 = vmatprep.subr.mxu0 0.0
    %52 = vmatpush1.msra.mxu0 0.0
    %53 = vmatprep.subr.mxu0 0.0
    %54 = vmatpush1.msra.mxu0 0.0
    %55 = vmatprep.subr.mxu0 0.0
    %56 = vmatpush1.msra.mxu0 0.0
    %57 = vmatprep.subr.mxu0 0.0
    %58 = vmatpush1.msra.mxu0 0.0
    %59 = vmatprep.subr.mxu0 0.0
    %60 = vmatpush1.msra.mxu0 0.0
    %61 = vmatprep.subr.mxu0 0.0
    %62 = vmatpush1.msra.mxu0 0.0
    %63 = vmatprep.subr.mxu0 0.0
    %64 = vmatpush1.msra.mxu0 0.0
    %65 = vmatprep.subr.mxu0 0.0
    %66 = vmatpush1.msra.mxu0 0.0
    %67 = vmatprep.subr.mxu0 0.0
    %68 = vmatpush1.msra.mxu0 0.0
    %69 = vmatprep.subr.mxu0 0.0
    %70 = vmatpush1.msra.mxu0 0.0
    %71 = vmatprep.subr.mxu0 0.0
    %72 = vmatpush1.msra.mxu0 0.0
    %73 = vmatprep.subr.mxu0 0.0
    %74 = vmatpush1.msra.mxu0 0.0
    %75 = vmatprep.subr.mxu0 0.0
    %76 = vmatpush1.msra.mxu0 0.0
    %77 = vmatprep.subr.mxu0 0.0
    %78 = vmatpush1.msra.mxu0 0.0
    %79 = vmatprep.subr.mxu0 0.0
    %80 = vmatpush1.msra.mxu0 0.0
    %81 = vmatprep.subr.mxu0 0.0
    %82 = vmatpush1.msra.mxu0 0.0
    %83 = vmatprep.subr.mxu0 0.0
    %84 = vmatpush1.msra.mxu0 0.0
    %85 = vmatprep.subr.mxu0 0.0
    %86 = vmatpush1.msra.mxu0 0.0
    %87 = vmatprep.subr.mxu0 0.0
    %88 = vmatpush1.msra.mxu0 0.0
    %89 = vmatprep.subr.mxu0 0.0
    %90 = vmatpush1.msra.mxu0 0.0
    %91 = vmatprep.subr.mxu0 0.0
    %92 = vmatpush1.msra.mxu0 0.0
    %93 = vmatprep.subr.mxu0 0.0
    %94 = vmatpush1.msra.mxu0 0.0
    %95 = vmatprep.subr.mxu0 0.0
    %96 = vmatpush1.msra.mxu0 0.0
    %97 = vmatprep.subr.mxu0 0.0
    %98 = vmatpush1.msra.mxu0 0.0
    %99 = vmatprep.subr.mxu0 0.0
    %100 = vmatpush1.msra.mxu0 0.0
    %101 = vmatprep.subr.mxu0 0.0
    %102 = vmatpush1.msra.mxu0 0.0
    %103 = vmatprep.subr.mxu0 0.0
    %104 = vmatpush1.msra.mxu0 0.0
    %105 = vmatprep.mubr.f32.mxu0 0.0
    %106 = vmatmul.mubr.f32.gmra.mrb[0].mxu0 %v39
    %v107 = vpop.f32.mrb[0].mxu0
    %v108 = vadd.f32 0.0, %v107
    %v109 = vpop.f32.mrb[0].mxu0
    %110 = vdwg.mxu0
    %v111 = vadd.f32 %v32, %v108
    %v112 = vxor.u32 %v111, 2147483648
    %v113 = vmul.f32 %v112, 1.442695
    %v114 = vpow.pop %v113
    %v115 = vadd.f32 %v114, 1.0
    %v116 = vrcp.pop %v115
    %v117 = vmul.f32 1.0, %v116
    %v118 = vtanh.pop %v111
    %120 = vrot.lane.b32.xlu0 %v29, 32
    %v121 = vpop.permute.xlu0 %120
    %v123 = vmul.f32 %v117, %v121
    %125 = vrot.lane.b32.xlu0 %v118, 64
    %v126 = vpop.permute.xlu0 %125
    %v128 = vmul.f32 %v117, %v126
    %130 = vrot.lane.b32.xlu0 %v128, 32
    %v131 = vpop.permute.xlu0 %130
    %v133 = vadd.f32 %v123, %v131
    %v134 = vtanh.pop %v133
    %136 = vrot.lane.b32.xlu0 %v134, 64
    %v137 = vpop.permute.xlu0 %136
    %v139 = vmul.f32 %v117, %v137
    %141 = vrot.lane.b32.xlu0 %v139, 32
    %v142 = vpop.permute.xlu0 %141
    %s144 = scalar_lea.vmem %s4, %s30
    %vm145 = vcmask 254976
    %146 = vst.msk [vmem:[%s144] sm:$0x3] %vm145, %v142
    %148 = vrot.lane.b32.xlu0 %v133, 96
    %v149 = vpop.permute.xlu0 %148
  $region22: #{my_lstm_forward.6} parent=0 // loop_footer
    %s27 = sadd.s32 1, %s23
  $region23: #{my_lstm_forward.6} parent=0 // loop_footer_branch
    %22 = sbr.rel target = $region19
  $region24: #{my_lstm_forward.6} parent=0 // loop_exit
    _
  %vm151 = vcmask 254976
  %152 = vst.msk [vmem:[%s5] sm:$0x3] %vm151, %v28
  %153 = vst.msk [vmem:[%s6] sm:$0x3] %vm151, %v29
  // Predicated region
  $region25: #{my_lstm_forward.6} parent=0 // pred_check
    _
  $region26: #{my_lstm_forward.6} parent=0 // pred_check_branch
    %155 = sbr.rel (0) target = $region28
  $region27: #{my_lstm_forward.6} parent=0 // pred_region
    _
  $region28: #{my_lstm_forward.6} parent=0 // pred_fallthru
    _
  // Predicated region
  $region29: #{my_lstm_forward.6} parent=0 // pred_check
    _
  $region30: #{my_lstm_forward.6} parent=0 // pred_check_branch
    %157 = sbr.rel (0) target = $region32
  $region31: #{my_lstm_forward.6} parent=0 // pred_region
    _
  $region32: #{my_lstm_forward.6} parent=0 // pred_fallthru
    _
  // Predicated region
  $region33: #{my_lstm_forward.6} parent=0 // pred_check
    _
  $region34: #{my_lstm_forward.6} parent=0 // pred_check_branch
    %159 = sbr.rel (0) target = $region36
  $region35: #{my_lstm_forward.6} parent=0 // pred_region
    _
  $region36: #{my_lstm_forward.6} parent=0 // pred_fallthru
    _
  // Predicated region
  $region37: #{my_lstm_forward.6} parent=0 // pred_check
    _
  $region38: #{my_lstm_forward.6} parent=0 // pred_check_branch
    %161 = sbr.rel (0) target = $region40
  $region39: #{my_lstm_forward.6} parent=0 // pred_region
    _
  $region40: #{my_lstm_forward.6} parent=0 // pred_fallthru
    _
  // Predicated region
  $region41: #{my_lstm_forward.6} parent=0 // pred_check
    _
  $region42: #{my_lstm_forward.6} parent=0 // pred_check_branch
    %163 = sbr.rel (0) target = $region44
  $region43: #{my_lstm_forward.6} parent=0 // pred_region
    _
  $region44: #{my_lstm_forward.6} parent=0 // pred_fallthru
    _
  // Predicated region
  $region45: #{my_lstm_forward.6} parent=0 // pred_check
    _
  $region46: #{my_lstm_forward.6} parent=0 // pred_check_branch
    %165 = sbr.rel (0) target = $region48
  $region47: #{my_lstm_forward.6} parent=0 // pred_region
    _
  $region48: #{my_lstm_forward.6} parent=0 // pred_fallthru
    _

// kernel: my_lstm_forward.7
$region0: #{my_lstm_forward.7}
  #allocation0 [shape = 'u32[]', space=smem, size = 0x4, offset = 0x4, fixed_abs, tag = 'smem constant byte address 0x4 - core index']
  #allocation1 [shape = 'u32[144,128]{1,0:T(1,128)}', space=vmem, size = 0x12000, scoped, tag = 'internal scratch']
  %s0 = inlined_call_operand.vmem [shape: f32[16,32], index: 0, kind: input, shape index: {}]
  %s1 = inlined_call_operand.vmem [shape: f32[32,128], index: 1, kind: input, shape index: {}]
  %s2 = inlined_call_operand.vmem [shape: f32[1,128], index: 2, kind: input, shape index: {}]
  %s3 = inlined_call_operand.vmem [shape: f32[16,128], index: 3, kind: output, shape index: {}]
  %s4 = sld [smem:[#allocation0]]
  $region22: #{my_lstm_forward.7} parent=0
    _
  %s6 = ssub.s32 1, %s4
  %s7 = scalar_select 0, %s6, %s4
  // Predicated region
  $region2: #{my_lstm_forward.7} parent=0 // pred_check
    _
  $region3: #{my_lstm_forward.7} parent=0 // pred_check_branch
    %9 = sbr.rel (0) target = $region5
  $region4: #{my_lstm_forward.7} parent=0 // pred_region
    _
  $region5: #{my_lstm_forward.7} parent=0 // pred_fallthru
    _
  // Predicated region
  $region6: #{my_lstm_forward.7} parent=0 // pred_check
    _
  $region7: #{my_lstm_forward.7} parent=0 // pred_check_branch
    %11 = sbr.rel (0) target = $region9
  $region8: #{my_lstm_forward.7} parent=0 // pred_region
    _
  $region9: #{my_lstm_forward.7} parent=0 // pred_fallthru
    _
  // Predicated region
  $region10: #{my_lstm_forward.7} parent=0 // pred_check
    _
  $region11: #{my_lstm_forward.7} parent=0 // pred_check_branch
    %13 = sbr.rel (0) target = $region13
  $region12: #{my_lstm_forward.7} parent=0 // pred_region
    _
  $region13: #{my_lstm_forward.7} parent=0 // pred_fallthru
    _
  %v14 = vld [vmem:[%s0] sm:$0xff]
  %v15 = vld [vmem:[%s0 + $0x8] sm:$0xff]
  %v16 = vld [vmem:[%s1] sm:$0xff]
  %v17 = vld [vmem:[%s1 + $0x8] sm:$0xff]
  %v18 = vld [vmem:[%s1 + $0x10] sm:$0xff]
  %v19 = vld [vmem:[%s1 + $0x18] sm:$0xff]
  %v20 = vld [vmem:[%s2] sm:$0x1]
  %v22 = vlaneseq
  %v23 = vshrl.u32 %v22, 7
  %v24 = vsub.s32 0, %v23
  %v25 = vrot.slane %v20, %v24
  %vm27 = vcmask 261120
  %v29 = vsel %vm27, %v14, 0
  %v32 = vsel %vm27, %v15, 0
  %34 = vmatprep.subr.mxu0 0.0
  %35 = vmatpush1.msra.mxu0 %v16
  %36 = vmatprep.subr.mxu0 0.0
  %37 = vmatpush1.msra.mxu0 %v17
  %38 = vmatprep.subr.mxu0 0.0
  %39 = vmatpush1.msra.mxu0 %v18
  %40 = vmatprep.subr.mxu0 0.0
  %41 = vmatpush1.msra.mxu0 %v19
  %42 = vmatprep.subr.mxu0 0.0
  %43 = vmatpush1.msra.mxu0 0.0
  %44 = vmatprep.subr.mxu0 0.0
  %45 = vmatpush1.msra.mxu0 0.0
  %46 = vmatprep.subr.mxu0 0.0
  %47 = vmatpush1.msra.mxu0 0.0
  %48 = vmatprep.subr.mxu0 0.0
  %49 = vmatpush1.msra.mxu0 0.0
  %50 = vmatprep.subr.mxu0 0.0
  %51 = vmatpush1.msra.mxu0 0.0
  %52 = vmatprep.subr.mxu0 0.0
  %53 = vmatpush1.msra.mxu0 0.0
  %54 = vmatprep.subr.mxu0 0.0
  %55 = vmatpush1.msra.mxu0 0.0
  %56 = vmatprep.subr.mxu0 0.0
  %57 = vmatpush1.msra.mxu0 0.0
  %58 = vmatprep.subr.mxu0 0.0
  %59 = vmatpush1.msra.mxu0 0.0
  %60 = vmatprep.subr.mxu0 0.0
  %61 = vmatpush1.msra.mxu0 0.0
  %62 = vmatprep.subr.mxu0 0.0
  %63 = vmatpush1.msra.mxu0 0.0
  %64 = vmatprep.subr.mxu0 0.0
  %65 = vmatpush1.msra.mxu0 0.0
  %66 = vmatprep.subr.mxu0 0.0
  %67 = vmatpush1.msra.mxu0 0.0
  %68 = vmatprep.subr.mxu0 0.0
  %69 = vmatpush1.msra.mxu0 0.0
  %70 = vmatprep.subr.mxu0 0.0
  %71 = vmatpush1.msra.mxu0 0.0
  %72 = vmatprep.subr.mxu0 0.0
  %73 = vmatpush1.msra.mxu0 0.0
  %74 = vmatprep.subr.mxu0 0.0
  %75 = vmatpush1.msra.mxu0 0.0
  %76 = vmatprep.subr.mxu0 0.0
  %77 = vmatpush1.msra.mxu0 0.0
  %78 = vmatprep.subr.mxu0 0.0
  %79 = vmatpush1.msra.mxu0 0.0
  %80 = vmatprep.subr.mxu0 0.0
  %81 = vmatpush1.msra.mxu0 0.0
  %82 = vmatprep.subr.mxu0 0.0
  %83 = vmatpush1.msra.mxu0 0.0
  %84 = vmatprep.subr.mxu0 0.0
  %85 = vmatpush1.msra.mxu0 0.0
  %86 = vmatprep.subr.mxu0 0.0
  %87 = vmatpush1.msra.mxu0 0.0
  %88 = vmatprep.subr.mxu0 0.0
  %89 = vmatpush1.msra.mxu0 0.0
  %90 = vmatprep.subr.mxu0 0.0
  %91 = vmatpush1.msra.mxu0 0.0
  %92 = vmatprep.subr.mxu0 0.0
  %93 = vmatpush1.msra.mxu0 0.0
  %94 = vmatprep.subr.mxu0 0.0
  %95 = vmatpush1.msra.mxu0 0.0
  %96 = vmatprep.subr.mxu0 0.0
  %97 = vmatpush1.msra.mxu0 0.0
  %98 = vmatprep.mubr.f32.mxu0 0.0
  %99 = vmatmul.mubr.f32.gmra.mrb[0].mxu0 %v29
  %v100 = vpop.f32.mrb[0].mxu0
  %v101 = vadd.f32 %v25, %v100
  %v102 = vpop.f32.mrb[0].mxu0
  %103 = vmatprep.mubr.f32.mxu0 0.0
  %104 = vmatmul.mubr.f32.gmra.mrb[0].mxu0 %v32
  %v105 = vpop.f32.mrb[0].mxu0
  %v106 = vadd.f32 %v25, %v105
  %v107 = vpop.f32.mrb[0].mxu0
  %108 = vdwg.mxu0
  %109 = vst [vmem:[%s3] sm:$0xff] %v101
  %110 = vst [vmem:[%s3 + $0x8] sm:$0xff] %v106
  // Predicated region
  $region14: #{my_lstm_forward.7} parent=0 // pred_check
    _
  $region15: #{my_lstm_forward.7} parent=0 // pred_check_branch
    %112 = sbr.rel (0) target = $region17
  $region16: #{my_lstm_forward.7} parent=0 // pred_region
    _
  $region17: #{my_lstm_forward.7} parent=0 // pred_fallthru
    _
  // Predicated region
  $region18: #{my_lstm_forward.7} parent=0 // pred_check
    _
  $region19: #{my_lstm_forward.7} parent=0 // pred_check_branch
    %114 = sbr.rel (0) target = $region21
  $region20: #{my_lstm_forward.7} parent=0 // pred_region
    _
  $region21: #{my_lstm_forward.7} parent=0 // pred_fallthru
    _

// kernel: my_lstm_forward.5
$region0: #{my_lstm_forward.5}
  #allocation0 [shape = 'u32[]', space=smem, size = 0x4, offset = 0x4, fixed_abs, tag = 'smem constant byte address 0x4 - core index']
  #allocation1 [shape = 'u32[144,128]{1,0:T(1,128)}', space=vmem, size = 0x12000, scoped, tag = 'internal scratch']
  %s0 = inlined_call_operand.vmem [shape: f32[16,16], index: 0, kind: input, shape index: {}]
  %s1 = inlined_call_operand.vmem [shape: f32[16,128], index: 1, kind: input, shape index: {}]
  %s2 = inlined_call_operand.vmem [shape: f32[1,128], index: 2, kind: input, shape index: {}]
  %s3 = inlined_call_operand.vmem [shape: f32[16,128], index: 3, kind: output, shape index: {}]
  %s4 = sld [smem:[#allocation0]]
  $region22: #{my_lstm_forward.5} parent=0
    _
  %s6 = ssub.s32 1, %s4
  %s7 = scalar_select 0, %s6, %s4
  // Predicated region
  $region2: #{my_lstm_forward.5} parent=0 // pred_check
    _
  $region3: #{my_lstm_forward.5} parent=0 // pred_check_branch
    %9 = sbr.rel (0) target = $region5
  $region4: #{my_lstm_forward.5} parent=0 // pred_region
    _
  $region5: #{my_lstm_forward.5} parent=0 // pred_fallthru
    _
  // Predicated region
  $region6: #{my_lstm_forward.5} parent=0 // pred_check
    _
  $region7: #{my_lstm_forward.5} parent=0 // pred_check_branch
    %11 = sbr.rel (0) target = $region9
  $region8: #{my_lstm_forward.5} parent=0 // pred_region
    _
  $region9: #{my_lstm_forward.5} parent=0 // pred_fallthru
    _
  // Predicated region
  $region10: #{my_lstm_forward.5} parent=0 // pred_check
    _
  $region11: #{my_lstm_forward.5} parent=0 // pred_check_branch
    %13 = sbr.rel (0) target = $region13
  $region12: #{my_lstm_forward.5} parent=0 // pred_region
    _
  $region13: #{my_lstm_forward.5} parent=0 // pred_fallthru
    _
  %v14 = vld [vmem:[%s0] sm:$0xff]
  %v15 = vld [vmem:[%s0 + $0x8] sm:$0xff]
  %v16 = vld [vmem:[%s1] sm:$0xff]
  %v17 = vld [vmem:[%s1 + $0x8] sm:$0xff]
  %v18 = vld [vmem:[%s2] sm:$0x1]
  %v20 = vlaneseq
  %v21 = vshrl.u32 %v20, 7
  %v22 = vsub.s32 0, %v21
  %v23 = vrot.slane %v18, %v22
  %vm25 = vcmask 130048
  %v27 = vsel %vm25, %v14, 0
  %v30 = vsel %vm25, %v15, 0
  %32 = vmatprep.subr.mxu0 0.0
  %33 = vmatpush1.msra.mxu0 %v16
  %34 = vmatprep.subr.mxu0 0.0
  %35 = vmatpush1.msra.mxu0 %v17
  %36 = vmatprep.subr.mxu0 0.0
  %37 = vmatpush1.msra.mxu0 0.0
  %38 = vmatprep.subr.mxu0 0.0
  %39 = vmatpush1.msra.mxu0 0.0
  %40 = vmatprep.subr.mxu0 0.0
  %41 = vmatpush1.msra.mxu0 0.0
  %42 = vmatprep.subr.mxu0 0.0
  %43 = vmatpush1.msra.mxu0 0.0
  %44 = vmatprep.subr.mxu0 0.0
  %45 = vmatpush1.msra.mxu0 0.0
  %46 = vmatprep.subr.mxu0 0.0
  %47 = vmatpush1.msra.mxu0 0.0
  %48 = vmatprep.subr.mxu0 0.0
  %49 = vmatpush1.msra.mxu0 0.0
  %50 = vmatprep.subr.mxu0 0.0
  %51 = vmatpush1.msra.mxu0 0.0
  %52 = vmatprep.subr.mxu0 0.0
  %53 = vmatpush1.msra.mxu0 0.0
  %54 = vmatprep.subr.mxu0 0.0
  %55 = vmatpush1.msra.mxu0 0.0
  %56 = vmatprep.subr.mxu0 0.0
  %57 = vmatpush1.msra.mxu0 0.0
  %58 = vmatprep.subr.mxu0 0.0
  %59 = vmatpush1.msra.mxu0 0.0
  %60 = vmatprep.subr.mxu0 0.0
  %61 = vmatpush1.msra.mxu0 0.0
  %62 = vmatprep.subr.mxu0 0.0
  %63 = vmatpush1.msra.mxu0 0.0
  %64 = vmatprep.subr.mxu0 0.0
  %65 = vmatpush1.msra.mxu0 0.0
  %66 = vmatprep.subr.mxu0 0.0
  %67 = vmatpush1.msra.mxu0 0.0
  %68 = vmatprep.subr.mxu0 0.0
  %69 = vmatpush1.msra.mxu0 0.0
  %70 = vmatprep.subr.mxu0 0.0
  %71 = vmatpush1.msra.mxu0 0.0
  %72 = vmatprep.subr.mxu0 0.0
  %73 = vmatpush1.msra.mxu0 0.0
  %74 = vmatprep.subr.mxu0 0.0
  %75 = vmatpush1.msra.mxu0 0.0
  %76 = vmatprep.subr.mxu0 0.0
  %77 = vmatpush1.msra.mxu0 0.0
  %78 = vmatprep.subr.mxu0 0.0
  %79 = vmatpush1.msra.mxu0 0.0
  %80 = vmatprep.subr.mxu0 0.0
  %81 = vmatpush1.msra.mxu0 0.0
  %82 = vmatprep.subr.mxu0 0.0
  %83 = vmatpush1.msra.mxu0 0.0
  %84 = vmatprep.subr.mxu0 0.0
  %85 = vmatpush1.msra.mxu0 0.0
  %86 = vmatprep.subr.mxu0 0.0
  %87 = vmatpush1.msra.mxu0 0.0
  %88 = vmatprep.subr.mxu0 0.0
  %89 = vmatpush1.msra.mxu0 0.0
  %90 = vmatprep.subr.mxu0 0.0
  %91 = vmatpush1.msra.mxu0 0.0
  %92 = vmatprep.subr.mxu0 0.0
  %93 = vmatpush1.msra.mxu0 0.0
  %94 = vmatprep.subr.mxu0 0.0
  %95 = vmatpush1.msra.mxu0 0.0
  %96 = vmatprep.mubr.f32.mxu0 0.0
  %97 = vmatmul.mubr.f32.gmra.mrb[0].mxu0 %v27
  %v98 = vpop.f32.mrb[0].mxu0
  %v99 = vadd.f32 %v23, %v98
  %v100 = vpop.f32.mrb[0].mxu0
  %101 = vmatprep.mubr.f32.mxu0 0.0
  %102 = vmatmul.mubr.f32.gmra.mrb[0].mxu0 %v30
  %v103 = vpop.f32.mrb[0].mxu0
  %v104 = vadd.f32 %v23, %v103
  %v105 = vpop.f32.mrb[0].mxu0
  %106 = vdwg.mxu0
  %107 = vst [vmem:[%s3] sm:$0xff] %v99
  %108 = vst [vmem:[%s3 + $0x8] sm:$0xff] %v104
  // Predicated region
  $region14: #{my_lstm_forward.5} parent=0 // pred_check
    _
  $region15: #{my_lstm_forward.5} parent=0 // pred_check_branch
    %110 = sbr.rel (0) target = $region17
  $region16: #{my_lstm_forward.5} parent=0 // pred_region
    _
  $region17: #{my_lstm_forward.5} parent=0 // pred_fallthru
    _
  // Predicated region
  $region18: #{my_lstm_forward.5} parent=0 // pred_check
    _
  $region19: #{my_lstm_forward.5} parent=0 // pred_check_branch
    %112 = sbr.rel (0) target = $region21
  $region20: #{my_lstm_forward.5} parent=0 // pred_region
    _
  $region21: #{my_lstm_forward.5} parent=0 // pred_fallthru
    _

// kernel: my_lstm_forward.9
$region0: #{my_lstm_forward.9}
  #allocation0 [shape = 'u32[]', space=smem, size = 0x4, offset = 0x4, fixed_abs, tag = 'smem constant byte address 0x4 - core index']
  #allocation1 [shape = 'u32[144,128]{1,0:T(1,128)}', space=vmem, size = 0x12000, scoped, tag = 'internal scratch']
  %s0 = inlined_call_operand.vmem [shape: f32[16,32], index: 0, kind: input, shape index: {}]
  %s1 = inlined_call_operand.vmem [shape: f32[32,128], index: 1, kind: input, shape index: {}]
  %s2 = inlined_call_operand.vmem [shape: f32[1,128], index: 2, kind: input, shape index: {}]
  %s3 = inlined_call_operand.hbm [shape: f32[16,128], index: 3, kind: output, shape index: {}]
  %s4 = sld [smem:[#allocation0]]
  $region22: #{my_lstm_forward.9} parent=0
    _
  %s6 = ssub.s32 1, %s4
  %s7 = scalar_select 0, %s6, %s4
  $region1: #{my_lstm_forward.9} parent=0
    #allocation2 [shape = 'u8[8192]{0}', space=vmem, size = 0x2000, scoped, tag = 'output window, operand 0, single buffered']
    #allocation3 [shape = 's32[1]{0}', space=sflag, size = 0x4, scoped, tag = 'scoped memory for my_lstm_forward.9']
    %8 = vsyncpa [#allocation3], 0
    // Predicated region
    $region2: #{my_lstm_forward.9} parent=1 // pred_check
      _
    $region3: #{my_lstm_forward.9} parent=1 // pred_check_branch
      %10 = sbr.rel (0) target = $region5
    $region4: #{my_lstm_forward.9} parent=1 // pred_region
      _
    $region5: #{my_lstm_forward.9} parent=1 // pred_fallthru
      _
    // Predicated region
    $region6: #{my_lstm_forward.9} parent=1 // pred_check
      _
    $region7: #{my_lstm_forward.9} parent=1 // pred_check_branch
      %12 = sbr.rel (0) target = $region9
    $region8: #{my_lstm_forward.9} parent=1 // pred_region
      _
    $region9: #{my_lstm_forward.9} parent=1 // pred_fallthru
      _
    // Predicated region
    $region10: #{my_lstm_forward.9} parent=1 // pred_check
      _
    $region11: #{my_lstm_forward.9} parent=1 // pred_check_branch
      %14 = sbr.rel (0) target = $region13
    $region12: #{my_lstm_forward.9} parent=1 // pred_region
      _
    $region13: #{my_lstm_forward.9} parent=1 // pred_fallthru
      _
    %v15 = vld [vmem:[%s0] sm:$0xff]
    %v16 = vld [vmem:[%s0 + $0x8] sm:$0xff]
    %v17 = vld [vmem:[%s1] sm:$0xff]
    %v18 = vld [vmem:[%s1 + $0x8] sm:$0xff]
    %v19 = vld [vmem:[%s1 + $0x10] sm:$0xff]
    %v20 = vld [vmem:[%s1 + $0x18] sm:$0xff]
    %v21 = vld [vmem:[%s2] sm:$0x1]
    %v23 = vlaneseq
    %v24 = vshrl.u32 %v23, 7
    %v25 = vsub.s32 0, %v24
    %v26 = vrot.slane %v21, %v25
    %vm28 = vcmask 261120
    %v30 = vsel %vm28, %v15, 0
    %v33 = vsel %vm28, %v16, 0
    %35 = vmatprep.subr.mxu0 0.0
    %36 = vmatpush1.msra.mxu0 %v17
    %37 = vmatprep.subr.mxu0 0.0
    %38 = vmatpush1.msra.mxu0 %v18
    %39 = vmatprep.subr.mxu0 0.0
    %40 = vmatpush1.msra.mxu0 %v19
    %41 = vmatprep.subr.mxu0 0.0
    %42 = vmatpush1.msra.mxu0 %v20
    %43 = vmatprep.subr.mxu0 0.0
    %44 = vmatpush1.msra.mxu0 0.0
    %45 = vmatprep.subr.mxu0 0.0
    %46 = vmatpush1.msra.mxu0 0.0
    %47 = vmatprep.subr.mxu0 0.0
    %48 = vmatpush1.msra.mxu0 0.0
    %49 = vmatprep.subr.mxu0 0.0
    %50 = vmatpush1.msra.mxu0 0.0
    %51 = vmatprep.subr.mxu0 0.0
    %52 = vmatpush1.msra.mxu0 0.0
    %53 = vmatprep.subr.mxu0 0.0
    %54 = vmatpush1.msra.mxu0 0.0
    %55 = vmatprep.subr.mxu0 0.0
    %56 = vmatpush1.msra.mxu0 0.0
    %57 = vmatprep.subr.mxu0 0.0
    %58 = vmatpush1.msra.mxu0 0.0
    %59 = vmatprep.subr.mxu0 0.0
    %60 = vmatpush1.msra.mxu0 0.0
    %61 = vmatprep.subr.mxu0 0.0
    %62 = vmatpush1.msra.mxu0 0.0
    %63 = vmatprep.subr.mxu0 0.0
    %64 = vmatpush1.msra.mxu0 0.0
    %65 = vmatprep.subr.mxu0 0.0
    %66 = vmatpush1.msra.mxu0 0.0
    %67 = vmatprep.subr.mxu0 0.0
    %68 = vmatpush1.msra.mxu0 0.0
    %69 = vmatprep.subr.mxu0 0.0
    %70 = vmatpush1.msra.mxu0 0.0
    %71 = vmatprep.subr.mxu0 0.0
    %72 = vmatpush1.msra.mxu0 0.0
    %73 = vmatprep.subr.mxu0 0.0
    %74 = vmatpush1.msra.mxu0 0.0
    %75 = vmatprep.subr.mxu0 0.0
    %76 = vmatpush1.msra.mxu0 0.0
    %77 = vmatprep.subr.mxu0 0.0
    %78 = vmatpush1.msra.mxu0 0.0
    %79 = vmatprep.subr.mxu0 0.0
    %80 = vmatpush1.msra.mxu0 0.0
    %81 = vmatprep.subr.mxu0 0.0
    %82 = vmatpush1.msra.mxu0 0.0
    %83 = vmatprep.subr.mxu0 0.0
    %84 = vmatpush1.msra.mxu0 0.0
    %85 = vmatprep.subr.mxu0 0.0
    %86 = vmatpush1.msra.mxu0 0.0
    %87 = vmatprep.subr.mxu0 0.0
    %88 = vmatpush1.msra.mxu0 0.0
    %89 = vmatprep.subr.mxu0 0.0
    %90 = vmatpush1.msra.mxu0 0.0
    %91 = vmatprep.subr.mxu0 0.0
    %92 = vmatpush1.msra.mxu0 0.0
    %93 = vmatprep.subr.mxu0 0.0
    %94 = vmatpush1.msra.mxu0 0.0
    %95 = vmatprep.subr.mxu0 0.0
    %96 = vmatpush1.msra.mxu0 0.0
    %97 = vmatprep.subr.mxu0 0.0
    %98 = vmatpush1.msra.mxu0 0.0
    %99 = vmatprep.mubr.f32.mxu0 0.0
    %100 = vmatmul.mubr.f32.gmra.mrb[0].mxu0 %v30
    %v101 = vpop.f32.mrb[0].mxu0
    %v102 = vadd.f32 %v26, %v101
    %v103 = vpop.f32.mrb[0].mxu0
    %104 = vmatprep.mubr.f32.mxu0 0.0
    %105 = vmatmul.mubr.f32.gmra.mrb[0].mxu0 %v33
    %v106 = vpop.f32.mrb[0].mxu0
    %v107 = vadd.f32 %v26, %v106
    %v108 = vpop.f32.mrb[0].mxu0
    %109 = vdwg.mxu0
    %v110 = vxor.u32 %v102, 2147483648
    %v111 = vxor.u32 %v107, 2147483648
    %v112 = vmul.f32 %v110, 1.442695
    %v113 = vpow.pop %v112
    %v114 = vmul.f32 %v111, 1.442695
    %v115 = vpow.pop %v114
    %v116 = vadd.f32 %v113, 1.0
    %v117 = vadd.f32 %v115, 1.0
    %v118 = vrcp.pop %v116
    %v119 = vmul.f32 1.0, %v118
    %v120 = vrcp.pop %v117
    %v121 = vmul.f32 1.0, %v120
    %122 = vst [vmem:[#allocation2] sm:$0xff] %v119
    %123 = vst [vmem:[#allocation2 + $0x8] sm:$0xff] %v121
    // Predicated region
    $region14: #{my_lstm_forward.9} parent=1 // pred_check
      _
    $region15: #{my_lstm_forward.9} parent=1 // pred_check_branch
      %125 = sbr.rel (0) target = $region17
    $region16: #{my_lstm_forward.9} parent=1 // pred_region
      %s127 = ssub.s32 256, 256
      %128 = vsyncadd [#allocation3], %s127
      %s129 = sshll.u32 [#allocation2], 4
      %s130 = int_to_ptr.vmem [resolvable:$true] %s129
      %135 = dma.vmem_to_hbm [thread:$0]  %s130, 256, %s3, [#allocation3], 128, 128, 8
    $region17: #{my_lstm_forward.9} parent=1 // pred_fallthru
      _
    // Predicated region
    $region18: #{my_lstm_forward.9} parent=1 // pred_check
      _
    $region19: #{my_lstm_forward.9} parent=1 // pred_check_branch
      %137 = sbr.rel (0) target = $region21
    $region20: #{my_lstm_forward.9} parent=1 // pred_region
      %138 = dma.done [#allocation3], 256
    $region21: #{my_lstm_forward.9} parent=1 // pred_fallthru
      _
    %139 = vsyncpa [#allocation3], 1

</llo_original>
